<compile_context>
chip_gen: v6e
topology: v6e:2x2x1
jax: 0.10.0
libtpu: 0.0.40
codegen_flags: <defaults>
</compile_context>

<pallas_src>
import jax
import jax.numpy as jnp
from jax.experimental import pallas as pl
from jax.experimental.pallas import tpu as pltpu

NUM_VALUES = 10
ACTION_VALUE = jnp.array(
    [[-0.9], [-0.7], [-0.5], [-0.3], [-0.1],
     [0.1], [0.3], [0.5], [0.7], [0.9]], dtype=jnp.float32)  # (10, 1)


def _round_up(x, m):
    return (x + m - 1) // m * m


# ------------------------------- kernels -------------------------------------
def _mlp_tail(h_pre, b1_ref, w2_ref, b2_ref, w3_ref, b3_ref, out_ref):
    """bias+ReLU -> layer2 -> ReLU -> head.  Epilogues stay in f32."""
    h1 = jnp.maximum(h_pre + b1_ref[...], 0.0)
    h2 = jnp.dot(h1.astype(w2_ref.dtype), w2_ref[...],
                 preferred_element_type=jnp.float32)
    h2 = jnp.maximum(h2 + b2_ref[...], 0.0)
    v = jnp.dot(h2.astype(w3_ref.dtype), w3_ref[...],
                preferred_element_type=jnp.float32)
    out_ref[...] = v + b3_ref[...]


def _critic_kernel(x_ref, w1_ref, b1_ref, w2_ref, b2_ref, w3_ref, b3_ref,
                   out_ref):
    """actions=None path: plain 3-layer MLP on the full-dim obs."""
    h_pre = jnp.dot(x_ref[...].astype(w1_ref.dtype), w1_ref[...],
                    preferred_element_type=jnp.float32)
    _mlp_tail(h_pre, b1_ref, w2_ref, b2_ref, w3_ref, b3_ref, out_ref)


def _critic_fused_kernel(obs_ref, act_ref, w1o_ref, w1a_ref, b1_ref,
                         w2_ref, b2_ref, w3_ref, b3_ref, out_ref):
    """actions path: action-value contraction + concat folded into layer 1."""
    h_pre = jnp.dot(obs_ref[...].astype(w1o_ref.dtype), w1o_ref[...],
                    preferred_element_type=jnp.float32)
    h_pre = h_pre + jnp.dot(act_ref[...].astype(w1a_ref.dtype), w1a_ref[...],
                            preferred_element_type=jnp.float32)
    _mlp_tail(h_pre, b1_ref, w2_ref, b2_ref, w3_ref, b3_ref, out_ref)


# --------------------------- pallas_call builder ------------------------------
def _pick_tb(batch):
    """Batch-tile size: big tiles (low per-step overhead) but >=2 grid steps."""
    CAP = 2048                      # a few MiB of tiles -> safe on v5e/v6e/v7x
    if batch <= 8:
        return batch                # one block == full batch axis (always legal)
    if batch >= 2 * CAP:
        return CAP
    # Aim for at least 2 grid steps so v7x's two TensorCores both get work.
    return max(8, min(CAP, _round_up((batch + 1) // 2, 8)))


def _run_mlp(kernel, tiled_inputs, const_inputs, n_out, tb):
    b = tiled_inputs[0].shape[0]
    grid = (pl.cdiv(b, tb),)        # ragged last block: Pallas masks the writes
    tiled_specs = [pl.BlockSpec((tb, a.shape[1]), lambda i: (i, 0))
                   for a in tiled_inputs]
    # Constant index_map -> weights/biases fetched once, stay VMEM-resident.
    const_specs = [pl.BlockSpec(a.shape, lambda i: (0, 0))
                   for a in const_inputs]
    return pl.pallas_call(
        kernel,
        out_shape=jax.ShapeDtypeStruct((b, n_out), jnp.float32),
        grid=grid,
        in_specs=tiled_specs + const_specs,
        out_specs=pl.BlockSpec((tb, n_out), lambda i: (i, 0)),
        compiler_params=pltpu.CompilerParams(
            dimension_semantics=("parallel",),      # shards batch across TCs on v7x
            vmem_limit_bytes=32 * 1024 * 1024),
    )(*tiled_inputs, *const_inputs)


# ----------------------------- jitted forwards --------------------------------
@jax.jit
def _forward_with_actions(obs, actions, w1_obs, w1a_fold, b1, w2, b2, w3, b3):
    b = obs.shape[0]
    act_flat = actions.reshape(b, -1)        # (B, K*10), layout-free reshape
    tb = _pick_tb(b)
    return _run_mlp(_critic_fused_kernel, [obs, act_flat],
                    [w1_obs, w1a_fold, b1, w2, b2, w3, b3], w3.shape[1], tb)


@jax.jit
def _forward_no_actions(obs, w1, b1, w2, b2, w3, b3):
    b = obs.shape[0]
    tb = _pick_tb(b)
    return _run_mlp(_critic_kernel, [obs],
                    [w1, b1, w2, b2, w3, b3], w3.shape[1], tb)


def _as_float(x):
    x = jnp.asarray(x)
    if not jnp.issubdtype(x.dtype, jnp.floating):
        x = x.astype(jnp.float32)
    return x     # f32 or bf16 both fine: kernel casts to weight dtype pre-MXU


# ------------------------------ Python wrapper --------------------------------
class CriticDiscretePallas:
    """CriticDiscrete with a 2-layer-MLP backbone, fused into one Pallas kernel.

    Backbone input dim is fixed at construction to obs_dim + action_groups,
    exactly like the PyTorch module (whose backbone has a fixed in-dim):
      * __call__(obs (B, obs_dim), actions (B, K, 10))  -> actions fused in.
      * __call__(obs (B, obs_dim + K), None)            -> plain MLP path.
    """

    def __init__(self, obs_dim, action_groups, hidden_dim=32, seed=0,
                 param_dtype=jnp.bfloat16):
        self.obs_dim = obs_dim
        self.action_groups = action_groups
        in_dim = obs_dim + action_groups
        h_pad = _round_up(hidden_dim, 128)   # lane-full hidden, zero-padded (exact)

        key = jax.random.PRNGKey(seed)
        ks = jax.random.split(key, 6)

        def linear_init(kw, kb, fan_in, fan_out, pad_in, pad_out):
            bound = 1.0 / float(fan_in) ** 0.5
            w = jax.random.uniform(kw, (fan_in, fan_out), jnp.float32,
                                   -bound, bound)
            b = jax.random.uniform(kb, (1, fan_out), jnp.float32, -bound, bound)
            w = jnp.pad(w, ((0, pad_in - fan_in), (0, pad_out - fan_out)))
            b = jnp.pad(b, ((0, 0), (0, pad_out - fan_out)))
            return w, b

        w1, b1 = linear_init(ks[0], ks[1], in_dim, hidden_dim, in_dim, h_pad)
        w2, b2 = linear_init(ks[2], ks[3], hidden_dim, hidden_dim, h_pad, h_pad)
        w3, b3 = linear_init(ks[4], ks[5], hidden_dim, NUM_VALUES, h_pad,
                             NUM_VALUES)

        # Fold the action-value contraction + concat into layer-1 weights:
        #   new_action @ W1[obs_dim:] == act_flat @ W1a_fold
        #   W1a_fold[k*10 + j, :] = action_value[j] * W1[obs_dim + k, :]
        w1_act = w1[obs_dim:, :]                                    # (K, H_pad)
        w1a_fold = (ACTION_VALUE.reshape(1, NUM_VALUES, 1)
                    * w1_act[:, None, :]).reshape(
                        action_groups * NUM_VALUES, h_pad)

        # Weights in bf16 (MXU datapath on v6e/v7x; halves weight DMA).
        self.w1_full = w1.astype(param_dtype)
        self.w1_obs = w1[:obs_dim, :].astype(param_dtype)
        self.w1a_fold = w1a_fold.astype(param_dtype)
        self.w2 = w2.astype(param_dtype)
        self.w3 = w3.astype(param_dtype)
        # Biases stay f32: bias+ReLU epilogue runs in f32 on every generation.
        self.b1, self.b2, self.b3 = b1, b2, b3

    def __call__(self, obs, actions=None):
        obs = _as_float(obs)
        if actions is not None:
            actions = _as_float(actions)     # (B, K, 10)
            return _forward_with_actions(obs, actions, self.w1_obs,
                                         self.w1a_fold, self.b1, self.w2,
                                         self.b2, self.w3, self.b3)
        return _forward_no_actions(obs, self.w1_full, self.b1, self.w2,
                                   self.b2, self.w3, self.b3)


# ------------------------------ reference (jnp) --------------------------------
def _reference(critic, obs, actions):
    obs = jnp.asarray(obs, jnp.float32)
    if actions is not None:
        act_flat = jnp.asarray(actions, jnp.float32).reshape(obs.shape[0], -1)
        h = (jnp.dot(obs.astype(critic.w1_obs.dtype), critic.w1_obs,
                     preferred_element_type=jnp.float32)
             + jnp.dot(act_flat.astype(critic.w1a_fold.dtype), critic.w1a_fold,
                       preferred_element_type=jnp.float32))
    else:
        h = jnp.dot(obs.astype(critic.w1_full.dtype), critic.w1_full,
                    preferred_element_type=jnp.float32)
    h = jnp.maximum(h + critic.b1, 0.0)
    h = jnp.maximum(jnp.dot(h.astype(critic.w2.dtype), critic.w2,
                            preferred_element_type=jnp.float32) + critic.b2, 0.0)
    return jnp.dot(h.astype(critic.w3.dtype), critic.w3,
                   preferred_element_type=jnp.float32) + critic.b3


# ---------------------------------- main ---------------------------------------
if __name__ == "__main__":
    key = jax.random.PRNGKey(0)
    k_obs, k_act = jax.random.split(key)

    batch, obs_dim, action_groups, hidden = 8, 12, 2, 32

    obs = jax.random.normal(k_obs, (batch, obs_dim), dtype=jnp.float32)
    logits = jax.random.normal(k_act, (batch, action_groups, NUM_VALUES),
                               dtype=jnp.float32)
    actions = jax.nn.softmax(logits, axis=-1)

    critic = CriticDiscretePallas(obs_dim=obs_dim, action_groups=action_groups,
                                  hidden_dim=hidden, seed=0)

    # Path 1: obs + actions (action-value contraction + concat fused in-kernel).
    values = critic(obs, actions)
    jax.block_until_ready(values)
    assert values.shape == (batch, NUM_VALUES)
    assert values.dtype == jnp.float32
    assert bool(jnp.allclose(values, _reference(critic, obs, actions),
                             rtol=5e-3, atol=5e-3))

    # Path 2: actions=None (obs already has the backbone's input dim, exactly
    # like the PyTorch module whose backbone in-dim is fixed).
    obs_full = jnp.concatenate(
        [obs, jnp.zeros((batch, action_groups), jnp.float32)], axis=1)
    values2 = critic(obs_full, None)
    jax.block_until_ready(values2)
    assert values2.shape == (batch, NUM_VALUES)
    assert bool(jnp.allclose(values2, _reference(critic, obs_full, None),
                             rtol=5e-3, atol=5e-3))

    # Path 3: ragged batch (cdiv grid, masked last block) with bf16 activations.
    b_r = 37
    obs_r = jax.random.normal(jax.random.PRNGKey(1), (b_r, obs_dim),
                              dtype=jnp.float32).astype(jnp.bfloat16)
    act_r = jax.nn.softmax(
        jax.random.normal(jax.random.PRNGKey(2),
                          (b_r, action_groups, NUM_VALUES), dtype=jnp.float32),
        axis=-1).astype(jnp.bfloat16)
    values3 = critic(obs_r, act_r)
    jax.block_until_ready(values3)
    assert values3.shape == (b_r, NUM_VALUES)
    assert bool(jnp.allclose(values3, _reference(critic, obs_r, act_r),
                             rtol=1e-2, atol=1e-2))

    print("KERNEL_OK")
</pallas_src>

<mosaic_0001>
module attributes {stable_mosaic.version = 11 : i64} {
  func.func @_critic_fused_kernel(%arg0: i32, %arg1: memref<8x12xf32, #tpu.memory_space<vmem>>, %arg2: memref<8x20xf32, #tpu.memory_space<vmem>>, %arg3: memref<12x128xbf16, #tpu.memory_space<vmem>>, %arg4: memref<20x128xbf16, #tpu.memory_space<vmem>>, %arg5: memref<1x128xf32, #tpu.memory_space<vmem>>, %arg6: memref<128x128xbf16, #tpu.memory_space<vmem>>, %arg7: memref<1x128xf32, #tpu.memory_space<vmem>>, %arg8: memref<128x10xbf16, #tpu.memory_space<vmem>>, %arg9: memref<1x10xf32, #tpu.memory_space<vmem>>, %arg10: memref<8x10xf32, #tpu.memory_space<vmem>>) attributes {dimension_semantics = [#tpu.dimension_semantics<parallel>], iteration_bounds = array<i64: 1>, scalar_prefetch = 0 : i64, scratch_operands = 0 : i64, tpu.core_type = #tpu.core_type<tc>, window_params = [{transform_indices = @transform_0, window_bounds = array<i64: 8, 12>}, {transform_indices = @transform_1, window_bounds = array<i64: 8, 20>}, {pipeline_mode = #tpu.pipeline_mode<synchronous>, transform_indices = @transform_2, window_bounds = array<i64: 12, 128>}, {pipeline_mode = #tpu.pipeline_mode<synchronous>, transform_indices = @transform_3, window_bounds = array<i64: 20, 128>}, {pipeline_mode = #tpu.pipeline_mode<synchronous>, transform_indices = @transform_4, window_bounds = array<i64: 1, 128>}, {pipeline_mode = #tpu.pipeline_mode<synchronous>, transform_indices = @transform_5, window_bounds = array<i64: 128, 128>}, {pipeline_mode = #tpu.pipeline_mode<synchronous>, transform_indices = @transform_6, window_bounds = array<i64: 1, 128>}, {pipeline_mode = #tpu.pipeline_mode<synchronous>, transform_indices = @transform_7, window_bounds = array<i64: 128, 10>}, {pipeline_mode = #tpu.pipeline_mode<synchronous>, transform_indices = @transform_8, window_bounds = array<i64: 1, 10>}, {transform_indices = @transform_9, window_bounds = array<i64: 8, 10>}]} {
    %c0 = arith.constant 0 : index
    %c0_0 = arith.constant 0 : index
    %0 = vector.load %arg1[%c0, %c0_0] : memref<8x12xf32, #tpu.memory_space<vmem>>, vector<8x12xf32>
    %1 = arith.truncf %0 : vector<8x12xf32> to vector<8x12xbf16>
    %c0_1 = arith.constant 0 : index
    %c0_2 = arith.constant 0 : index
    %2 = vector.load %arg3[%c0_1, %c0_2] : memref<12x128xbf16, #tpu.memory_space<vmem>>, vector<12x128xbf16>
    %cst = arith.constant dense<0.000000e+00> : vector<8x128xf32>
    %3 = tpu.matmul %1, %2, %cst {dimension_numbers = #tpu.dot_dimension_numbers<[1], [0], [0], [1], [0, 0, 1, 1], [], []>} : vector<8x12xbf16>, vector<12x128xbf16>, vector<8x128xf32> -> vector<8x128xf32>
    %c0_3 = arith.constant 0 : index
    %c0_4 = arith.constant 0 : index
    %4 = vector.load %arg2[%c0_3, %c0_4] : memref<8x20xf32, #tpu.memory_space<vmem>>, vector<8x20xf32>
    %5 = arith.truncf %4 : vector<8x20xf32> to vector<8x20xbf16>
    %c0_5 = arith.constant 0 : index
    %c0_6 = arith.constant 0 : index
    %6 = vector.load %arg4[%c0_5, %c0_6] : memref<20x128xbf16, #tpu.memory_space<vmem>>, vector<20x128xbf16>
    %cst_7 = arith.constant dense<0.000000e+00> : vector<8x128xf32>
    %7 = tpu.matmul %5, %6, %cst_7 {dimension_numbers = #tpu.dot_dimension_numbers<[1], [0], [0], [1], [0, 0, 1, 1], [], []>} : vector<8x20xbf16>, vector<20x128xbf16>, vector<8x128xf32> -> vector<8x128xf32>
    %8 = arith.addf %3, %7 : vector<8x128xf32>
    %c0_8 = arith.constant 0 : index
    %c0_9 = arith.constant 0 : index
    %9 = vector.load %arg5[%c0_8, %c0_9] : memref<1x128xf32, #tpu.memory_space<vmem>>, vector<1x128xf32>
    %10 = vector.broadcast %9 : vector<1x128xf32> to vector<8x128xf32>
    %11 = arith.addf %8, %10 : vector<8x128xf32>
    %cst_10 = arith.constant 0.000000e+00 : f32
    %12 = vector.broadcast %cst_10 : f32 to vector<8x128xf32>
    %13 = arith.maximumf %11, %12 : vector<8x128xf32>
    %14 = arith.truncf %13 : vector<8x128xf32> to vector<8x128xbf16>
    %c0_11 = arith.constant 0 : index
    %c0_12 = arith.constant 0 : index
    %15 = vector.load %arg6[%c0_11, %c0_12] : memref<128x128xbf16, #tpu.memory_space<vmem>>, vector<128x128xbf16>
    %cst_13 = arith.constant dense<0.000000e+00> : vector<8x128xf32>
    %16 = tpu.matmul %14, %15, %cst_13 {dimension_numbers = #tpu.dot_dimension_numbers<[1], [0], [0], [1], [0, 0, 1, 1], [], []>} : vector<8x128xbf16>, vector<128x128xbf16>, vector<8x128xf32> -> vector<8x128xf32>
    %c0_14 = arith.constant 0 : index
    %c0_15 = arith.constant 0 : index
    %17 = vector.load %arg7[%c0_14, %c0_15] : memref<1x128xf32, #tpu.memory_space<vmem>>, vector<1x128xf32>
    %18 = vector.broadcast %17 : vector<1x128xf32> to vector<8x128xf32>
    %19 = arith.addf %16, %18 : vector<8x128xf32>
    %cst_16 = arith.constant 0.000000e+00 : f32
    %20 = vector.broadcast %cst_16 : f32 to vector<8x128xf32>
    %21 = arith.maximumf %19, %20 : vector<8x128xf32>
    %22 = arith.truncf %21 : vector<8x128xf32> to vector<8x128xbf16>
    %c0_17 = arith.constant 0 : index
    %c0_18 = arith.constant 0 : index
    %23 = vector.load %arg8[%c0_17, %c0_18] : memref<128x10xbf16, #tpu.memory_space<vmem>>, vector<128x10xbf16>
    %cst_19 = arith.constant dense<0.000000e+00> : vector<8x10xf32>
    %24 = tpu.matmul %22, %23, %cst_19 {dimension_numbers = #tpu.dot_dimension_numbers<[1], [0], [0], [1], [0, 0, 1, 1], [], []>} : vector<8x128xbf16>, vector<128x10xbf16>, vector<8x10xf32> -> vector<8x10xf32>
    %c0_20 = arith.constant 0 : index
    %c0_21 = arith.constant 0 : index
    %25 = vector.load %arg9[%c0_20, %c0_21] : memref<1x10xf32, #tpu.memory_space<vmem>>, vector<1x10xf32>
    %26 = vector.broadcast %25 : vector<1x10xf32> to vector<8x10xf32>
    %27 = arith.addf %24, %26 : vector<8x10xf32>
    %c0_22 = arith.constant 0 : index
    %c0_23 = arith.constant 0 : index
    %28 = vector.load %arg10[%c0_22, %c0_23] : memref<8x10xf32, #tpu.memory_space<vmem>>, vector<8x10xf32>
    tpu.vector_store %arg10[%c0_22, %c0_23], %27 {strides = array<i32>} : memref<8x10xf32, #tpu.memory_space<vmem>>, vector<8x10xf32>,
    return
  }
  func.func @transform_0(%arg0: i32) -> (i32, i32) {
    %c0_i32 = arith.constant 0 : i32
    %c0_i32_0 = arith.constant 0 : i32
    return %arg0, %c0_i32 : i32, i32
  }
  func.func @transform_1(%arg0: i32) -> (i32, i32) {
    %c0_i32 = arith.constant 0 : i32
    %c0_i32_0 = arith.constant 0 : i32
    return %arg0, %c0_i32 : i32, i32
  }
  func.func @transform_2(%arg0: i32) -> (i32, i32) {
    %c0_i32 = arith.constant 0 : i32
    %c0_i32_0 = arith.constant 0 : i32
    %c0_i32_1 = arith.constant 0 : i32
    return %c0_i32, %c0_i32_0 : i32, i32
  }
  func.func @transform_3(%arg0: i32) -> (i32, i32) {
    %c0_i32 = arith.constant 0 : i32
    %c0_i32_0 = arith.constant 0 : i32
    %c0_i32_1 = arith.constant 0 : i32
    return %c0_i32, %c0_i32_0 : i32, i32
  }
  func.func @transform_4(%arg0: i32) -> (i32, i32) {
    %c0_i32 = arith.constant 0 : i32
    %c0_i32_0 = arith.constant 0 : i32
    %c0_i32_1 = arith.constant 0 : i32
    return %c0_i32, %c0_i32_0 : i32, i32
  }
  func.func @transform_5(%arg0: i32) -> (i32, i32) {
    %c0_i32 = arith.constant 0 : i32
    %c0_i32_0 = arith.constant 0 : i32
    %c0_i32_1 = arith.constant 0 : i32
    return %c0_i32, %c0_i32_0 : i32, i32
  }
  func.func @transform_6(%arg0: i32) -> (i32, i32) {
    %c0_i32 = arith.constant 0 : i32
    %c0_i32_0 = arith.constant 0 : i32
    %c0_i32_1 = arith.constant 0 : i32
    return %c0_i32, %c0_i32_0 : i32, i32
  }
  func.func @transform_7(%arg0: i32) -> (i32, i32) {
    %c0_i32 = arith.constant 0 : i32
    %c0_i32_0 = arith.constant 0 : i32
    %c0_i32_1 = arith.constant 0 : i32
    return %c0_i32, %c0_i32_0 : i32, i32
  }
  func.func @transform_8(%arg0: i32) -> (i32, i32) {
    %c0_i32 = arith.constant 0 : i32
    %c0_i32_0 = arith.constant 0 : i32
    %c0_i32_1 = arith.constant 0 : i32
    return %c0_i32, %c0_i32_0 : i32, i32
  }
  func.func @transform_9(%arg0: i32) -> (i32, i32) {
    %c0_i32 = arith.constant 0 : i32
    %c0_i32_0 = arith.constant 0 : i32
    return %arg0, %c0_i32 : i32, i32
  }
}

</mosaic_0001>

<llo_original>
// kernel: _forward_with_actions.1
$region0: #{_forward_with_actions.1}
  #allocation0 [shape = 'u32[]', space=smem, size = 0x4, offset = 0x4, fixed_abs, tag = 'smem constant byte address 0x4 - core index']
  #allocation1 [shape = 'u32[144,128]{1,0:T(1,128)}', space=vmem, size = 0x12000, scoped, tag = 'internal scratch']
  %s0 = inlined_call_operand.vmem [shape: f32[8,12], index: 0, kind: input, shape index: {}]
  %s1 = inlined_call_operand.vmem [shape: f32[8,20], index: 1, kind: input, shape index: {}]
  %s2 = inlined_call_operand.vmem [shape: bf16[12,128], index: 2, kind: input, shape index: {}]
  %s3 = inlined_call_operand.vmem [shape: bf16[20,128], index: 3, kind: input, shape index: {}]
  %s4 = inlined_call_operand.vmem [shape: f32[1,128], index: 4, kind: input, shape index: {}]
  %s5 = inlined_call_operand.vmem [shape: bf16[128,128], index: 5, kind: input, shape index: {}]
  %s6 = inlined_call_operand.vmem [shape: f32[1,128], index: 6, kind: input, shape index: {}]
  %s7 = inlined_call_operand.vmem [shape: bf16[128,10], index: 7, kind: input, shape index: {}]
  %s8 = inlined_call_operand.vmem [shape: f32[1,10], index: 8, kind: input, shape index: {}]
  %s9 = inlined_call_operand.hbm [shape: f32[8,10], index: 9, kind: output, shape index: {}]
  %s10 = sld [smem:[#allocation0]]
  $region46: #{_forward_with_actions.1} parent=0
    _
  %s12 = ssub.s32 1, %s10
  %s13 = scalar_select 0, %s12, %s10
  $region1: #{_forward_with_actions.1} parent=0
    #allocation2 [shape = 'u8[4096]{0}', space=vmem, size = 0x1000, scoped, tag = 'output window, operand 0, single buffered']
    #allocation3 [shape = 's32[1]{0}', space=sflag, size = 0x4, scoped, tag = 'scoped memory for _forward_with_actions.1']
    %14 = vsyncpa [#allocation3], 0
    // Predicated region
    $region2: #{_forward_with_actions.1} parent=1 // pred_check
      _
    $region3: #{_forward_with_actions.1} parent=1 // pred_check_branch
      %16 = sbr.rel (0) target = $region5
    $region4: #{_forward_with_actions.1} parent=1 // pred_region
      _
    $region5: #{_forward_with_actions.1} parent=1 // pred_fallthru
      _
    // Predicated region
    $region6: #{_forward_with_actions.1} parent=1 // pred_check
      _
    $region7: #{_forward_with_actions.1} parent=1 // pred_check_branch
      %18 = sbr.rel (0) target = $region9
    $region8: #{_forward_with_actions.1} parent=1 // pred_region
      _
    $region9: #{_forward_with_actions.1} parent=1 // pred_fallthru
      _
    // Predicated region
    $region10: #{_forward_with_actions.1} parent=1 // pred_check
      _
    $region11: #{_forward_with_actions.1} parent=1 // pred_check_branch
      %20 = sbr.rel (0) target = $region13
    $region12: #{_forward_with_actions.1} parent=1 // pred_region
      _
    $region13: #{_forward_with_actions.1} parent=1 // pred_fallthru
      _
    // Predicated region
    $region14: #{_forward_with_actions.1} parent=1 // pred_check
      _
    $region15: #{_forward_with_actions.1} parent=1 // pred_check_branch
      %22 = sbr.rel (0) target = $region17
    $region16: #{_forward_with_actions.1} parent=1 // pred_region
      _
    $region17: #{_forward_with_actions.1} parent=1 // pred_fallthru
      _
    // Predicated region
    $region18: #{_forward_with_actions.1} parent=1 // pred_check
      _
    $region19: #{_forward_with_actions.1} parent=1 // pred_check_branch
      %24 = sbr.rel (0) target = $region21
    $region20: #{_forward_with_actions.1} parent=1 // pred_region
      _
    $region21: #{_forward_with_actions.1} parent=1 // pred_fallthru
      _
    // Predicated region
    $region22: #{_forward_with_actions.1} parent=1 // pred_check
      _
    $region23: #{_forward_with_actions.1} parent=1 // pred_check_branch
      %26 = sbr.rel (0) target = $region25
    $region24: #{_forward_with_actions.1} parent=1 // pred_region
      _
    $region25: #{_forward_with_actions.1} parent=1 // pred_fallthru
      _
    // Predicated region
    $region26: #{_forward_with_actions.1} parent=1 // pred_check
      _
    $region27: #{_forward_with_actions.1} parent=1 // pred_check_branch
      %28 = sbr.rel (0) target = $region29
    $region28: #{_forward_with_actions.1} parent=1 // pred_region
      _
    $region29: #{_forward_with_actions.1} parent=1 // pred_fallthru
      _
    // Predicated region
    $region30: #{_forward_with_actions.1} parent=1 // pred_check
      _
    $region31: #{_forward_with_actions.1} parent=1 // pred_check_branch
      %30 = sbr.rel (0) target = $region33
    $region32: #{_forward_with_actions.1} parent=1 // pred_region
      _
    $region33: #{_forward_with_actions.1} parent=1 // pred_fallthru
      _
    // Predicated region
    $region34: #{_forward_with_actions.1} parent=1 // pred_check
      _
    $region35: #{_forward_with_actions.1} parent=1 // pred_check_branch
      %32 = sbr.rel (0) target = $region37
    $region36: #{_forward_with_actions.1} parent=1 // pred_region
      _
    $region37: #{_forward_with_actions.1} parent=1 // pred_fallthru
      _
    %v34 = vld [vmem:[%s0] sm:$0xff]
    %v35 = vpack.c.bf16 %v34, %v34
    %v36 = vld [vmem:[%s2] sm:$0xf]
    %v37 = vld [vmem:[%s2 + $0x4] sm:$0x3]
    %v38 = vld [vmem:[%s1] sm:$0xff]
    %v39 = vpack.c.bf16 %v38, %v38
    %v40 = vld [vmem:[%s3] sm:$0xf]
    %v41 = vld [vmem:[%s3 + $0x4] sm:$0xf]
    %v42 = vld [vmem:[%s3 + $0x8] sm:$0x3]
    %v46 = vunpack.c.l.b16 %v40
    %v47 = vunpack.c.l.b16 %v41
    %v48 = vunpack.c.l.b16 %v42
    %v49 = vpack.c.b16 %v47, %v46
    %v50 = vpack.c.b16 %v48, %v48
    %vm52 = vcmask 162816
    %v54 = vsel %vm52, %v39, 0
    %vm56 = vcmask 1041408
    %v58 = vsel %vm56, %v50, 0
    %60 = vmatprep.subr.bf16.mxu0 0
    %61 = vmatpush1.bf16.msra.mxu0 0
    %62 = vmatprep.subr.bf16.mxu0 0
    %63 = vmatpush1.bf16.msra.mxu0 0
    %64 = vmatprep.subr.bf16.mxu0 0
    %65 = vmatpush1.bf16.msra.mxu0 0
    %66 = vmatprep.subr.bf16.mxu0 0
    %67 = vmatpush1.bf16.msra.mxu0 0
    %68 = vmatprep.subr.bf16.mxu0 0
    %69 = vmatpush1.bf16.msra.mxu0 0
    %70 = vmatprep.subr.bf16.mxu0 0
    %71 = vmatpush1.bf16.msra.mxu0 0
    %72 = vmatprep.subr.bf16.mxu0 0
    %73 = vmatpush1.bf16.msra.mxu0 %v58
    %74 = vmatprep.subr.bf16.mxu0 0
    %75 = vmatpush1.bf16.msra.mxu0 %v49
    %76 = vmatprep.subr.bf16.mxu0 0
    %77 = vmatpush2.bf16.msra.mxu0 0
    %78 = vmatprep.subr.bf16.mxu0 0
    %79 = vmatpush2.bf16.msra.mxu0 0
    %80 = vmatprep.subr.bf16.mxu0 0
    %81 = vmatpush2.bf16.msra.mxu0 0
    %82 = vmatprep.subr.bf16.mxu0 0
    %83 = vmatpush2.bf16.msra.mxu0 0
    %84 = vmatprep.subr.bf16.mxu0 0
    %85 = vmatpush2.bf16.msra.mxu0 0
    %86 = vmatprep.subr.bf16.mxu0 0
    %87 = vmatpush2.bf16.msra.mxu0 0
    %88 = vmatprep.subr.bf16.mxu0 0
    %89 = vmatpush2.bf16.msra.mxu0 0
    %90 = vmatprep.subr.bf16.mxu0 0
    %91 = vmatpush2.bf16.msra.mxu0 0
    %92 = vmatprep.mubr.bf16.mxu0 0
    %93 = vmatmul.mubr.bf16.gmra.mxu0 %v54
    %v94 = vpop.f32.mrf.mxu0
    %v95 = vadd.f32 0.0, %v94
    %v96 = vpop.f32.mrf.mxu0
    %v97 = vpop.f32.mrf.mxu0
    %v98 = vpop.f32.mrf.mxu0
    %99 = vdwg.mxu0
    %v102 = vunpack.c.l.b16 %v36
    %v103 = vunpack.c.l.b16 %v37
    %v104 = vpack.c.b16 %v103, %v102
    %vm105 = vcmask 97280
    %v107 = vsel %vm105, %v35, 0
    %vm109 = vcmask 1045504
    %v111 = vsel %vm109, %v104, 0
    %113 = vmatprep.subr.bf16.mxu0 0
    %114 = vmatpush1.bf16.msra.mxu0 0
    %115 = vmatprep.subr.bf16.mxu0 0
    %116 = vmatpush1.bf16.msra.mxu0 0
    %117 = vmatprep.subr.bf16.mxu0 0
    %118 = vmatpush1.bf16.msra.mxu0 0
    %119 = vmatprep.subr.bf16.mxu0 0
    %120 = vmatpush1.bf16.msra.mxu0 0
    %121 = vmatprep.subr.bf16.mxu0 0
    %122 = vmatpush1.bf16.msra.mxu0 0
    %123 = vmatprep.subr.bf16.mxu0 0
    %124 = vmatpush1.bf16.msra.mxu0 0
    %125 = vmatprep.subr.bf16.mxu0 0
    %126 = vmatpush1.bf16.msra.mxu0 0
    %127 = vmatprep.subr.bf16.mxu0 0
    %128 = vmatpush1.bf16.msra.mxu0 %v111
    %129 = vmatprep.subr.bf16.mxu0 0
    %130 = vmatpush2.bf16.msra.mxu0 0
    %131 = vmatprep.subr.bf16.mxu0 0
    %132 = vmatpush2.bf16.msra.mxu0 0
    %133 = vmatprep.subr.bf16.mxu0 0
    %134 = vmatpush2.bf16.msra.mxu0 0
    %135 = vmatprep.subr.bf16.mxu0 0
    %136 = vmatpush2.bf16.msra.mxu0 0
    %137 = vmatprep.subr.bf16.mxu0 0
    %138 = vmatpush2.bf16.msra.mxu0 0
    %139 = vmatprep.subr.bf16.mxu0 0
    %140 = vmatpush2.bf16.msra.mxu0 0
    %141 = vmatprep.subr.bf16.mxu0 0
    %142 = vmatpush2.bf16.msra.mxu0 0
    %143 = vmatprep.subr.bf16.mxu0 0
    %144 = vmatpush2.bf16.msra.mxu0 0
    %145 = vmatprep.mubr.bf16.mxu0 0
    %146 = vmatmul.mubr.bf16.gmra.mxu0 %v107
    %v147 = vpop.f32.mrf.mxu0
    %v148 = vadd.f32 %v95, %v147
    %v149 = vpop.f32.mrf.mxu0
    %v150 = vpop.f32.mrf.mxu0
    %v151 = vpop.f32.mrf.mxu0
    %152 = vdwg.mxu0
    %v153 = vld [vmem:[%s4] sm:$0x1]
    %v155 = vlaneseq
    %v156 = vshrl.u32 %v155, 7
    %v157 = vsub.s32 0, %v156
    %v158 = vrot.slane %v153, %v157
    %v160 = vadd.f32 %v148, %v158
    %v161 = vmax.f32 %v160, 0.0
    %v162 = vpack.c.bf16 %v161, %v161
    %v163 = vld [vmem:[%s5] sm:$0xf]
    %v164 = vld [vmem:[%s5 + $0x4] sm:$0xf]
    %v165 = vld [vmem:[%s5 + $0x8] sm:$0xf]
    %v166 = vld [vmem:[%s5 + $0xc] sm:$0xf]
    %v167 = vld [vmem:[%s5 + $0x10] sm:$0xf]
    %v168 = vld [vmem:[%s5 + $0x14] sm:$0xf]
    %v169 = vld [vmem:[%s5 + $0x18] sm:$0xf]
    %v170 = vld [vmem:[%s5 + $0x1c] sm:$0xf]
    %v171 = vld [vmem:[%s5 + $0x20] sm:$0xf]
    %v172 = vld [vmem:[%s5 + $0x24] sm:$0xf]
    %v173 = vld [vmem:[%s5 + $0x28] sm:$0xf]
    %v174 = vld [vmem:[%s5 + $0x2c] sm:$0xf]
    %v175 = vld [vmem:[%s5 + $0x30] sm:$0xf]
    %v176 = vld [vmem:[%s5 + $0x34] sm:$0xf]
    %v177 = vld [vmem:[%s5 + $0x38] sm:$0xf]
    %v178 = vld [vmem:[%s5 + $0x3c] sm:$0xf]
    %v179 = vld [vmem:[%s6] sm:$0x1]
    %v181 = vlaneseq
    %v182 = vshrl.u32 %v181, 7
    %v183 = vsub.s32 0, %v182
    %v184 = vrot.slane %v179, %v183
    %v202 = vunpack.c.l.b16 %v163
    %v203 = vunpack.c.l.b16 %v164
    %v204 = vunpack.c.l.b16 %v165
    %v205 = vunpack.c.l.b16 %v166
    %v206 = vunpack.c.l.b16 %v167
    %v207 = vunpack.c.l.b16 %v168
    %v208 = vunpack.c.l.b16 %v169
    %v209 = vunpack.c.l.b16 %v170
    %v210 = vunpack.c.l.b16 %v171
    %v211 = vunpack.c.l.b16 %v172
    %v212 = vunpack.c.l.b16 %v173
    %v213 = vunpack.c.l.b16 %v174
    %v214 = vunpack.c.l.b16 %v175
    %v215 = vunpack.c.l.b16 %v176
    %v216 = vunpack.c.l.b16 %v177
    %v217 = vunpack.c.l.b16 %v178
    %v218 = vpack.c.b16 %v203, %v202
    %v219 = vpack.c.b16 %v205, %v204
    %v220 = vpack.c.b16 %v207, %v206
    %v221 = vpack.c.b16 %v209, %v208
    %v222 = vpack.c.b16 %v211, %v210
    %v223 = vpack.c.b16 %v213, %v212
    %v224 = vpack.c.b16 %v215, %v214
    %v225 = vpack.c.b16 %v217, %v216
    %234 = vmatprep.subr.bf16.mxu0 0
    %235 = vmatpush1.bf16.msra.mxu0 %v225
    %236 = vmatprep.subr.bf16.mxu0 0
    %237 = vmatpush1.bf16.msra.mxu0 %v224
    %238 = vmatprep.subr.bf16.mxu0 0
    %239 = vmatpush1.bf16.msra.mxu0 %v223
    %240 = vmatprep.subr.bf16.mxu0 0
    %241 = vmatpush1.bf16.msra.mxu0 %v222
    %242 = vmatprep.subr.bf16.mxu0 0
    %243 = vmatpush1.bf16.msra.mxu0 %v221
    %244 = vmatprep.subr.bf16.mxu0 0
    %245 = vmatpush1.bf16.msra.mxu0 %v220
    %246 = vmatprep.subr.bf16.mxu0 0
    %247 = vmatpush1.bf16.msra.mxu0 %v219
    %248 = vmatprep.subr.bf16.mxu0 0
    %249 = vmatpush1.bf16.msra.mxu0 %v218
    %250 = vmatprep.subr.bf16.mxu0 0
    %251 = vmatpush2.bf16.msra.mxu0 0
    %252 = vmatprep.subr.bf16.mxu0 0
    %253 = vmatpush2.bf16.msra.mxu0 0
    %254 = vmatprep.subr.bf16.mxu0 0
    %255 = vmatpush2.bf16.msra.mxu0 0
    %256 = vmatprep.subr.bf16.mxu0 0
    %257 = vmatpush2.bf16.msra.mxu0 0
    %258 = vmatprep.subr.bf16.mxu0 0
    %259 = vmatpush2.bf16.msra.mxu0 0
    %260 = vmatprep.subr.bf16.mxu0 0
    %261 = vmatpush2.bf16.msra.mxu0 0
    %262 = vmatprep.subr.bf16.mxu0 0
    %263 = vmatpush2.bf16.msra.mxu0 0
    %264 = vmatprep.subr.bf16.mxu0 0
    %265 = vmatpush2.bf16.msra.mxu0 0
    %266 = vmatprep.mubr.bf16.mxu0 0
    %267 = vmatmul.mubr.bf16.gmra.mxu0 %v162
    %v268 = vpop.f32.mrf.mxu0
    %v269 = vadd.f32 %v184, %v268
    %v270 = vpop.f32.mrf.mxu0
    %v271 = vpop.f32.mrf.mxu0
    %v272 = vpop.f32.mrf.mxu0
    %273 = vdwg.mxu0
    %v274 = vmax.f32 %v269, 0.0
    %v275 = vpack.c.bf16 %v274, %v274
    %v276 = vld [vmem:[%s7] sm:$0xf]
    %v277 = vld [vmem:[%s7 + $0x4] sm:$0xf]
    %v278 = vld [vmem:[%s7 + $0x8] sm:$0xf]
    %v279 = vld [vmem:[%s7 + $0xc] sm:$0xf]
    %v280 = vld [vmem:[%s7 + $0x10] sm:$0xf]
    %v281 = vld [vmem:[%s7 + $0x14] sm:$0xf]
    %v282 = vld [vmem:[%s7 + $0x18] sm:$0xf]
    %v283 = vld [vmem:[%s7 + $0x1c] sm:$0xf]
    %v284 = vld [vmem:[%s7 + $0x20] sm:$0xf]
    %v285 = vld [vmem:[%s7 + $0x24] sm:$0xf]
    %v286 = vld [vmem:[%s7 + $0x28] sm:$0xf]
    %v287 = vld [vmem:[%s7 + $0x2c] sm:$0xf]
    %v288 = vld [vmem:[%s7 + $0x30] sm:$0xf]
    %v289 = vld [vmem:[%s7 + $0x34] sm:$0xf]
    %v290 = vld [vmem:[%s7 + $0x38] sm:$0xf]
    %v291 = vld [vmem:[%s7 + $0x3c] sm:$0xf]
    %v292 = vld [vmem:[%s8] sm:$0x1]
    %v294 = vlaneseq
    %v295 = vshrl.u32 %v294, 7
    %v296 = vsub.s32 0, %v295
    %v297 = vrot.slane %v292, %v296
    %v315 = vunpack.c.l.b16 %v276
    %v316 = vunpack.c.l.b16 %v277
    %v317 = vunpack.c.l.b16 %v278
    %v318 = vunpack.c.l.b16 %v279
    %v319 = vunpack.c.l.b16 %v280
    %v320 = vunpack.c.l.b16 %v281
    %v321 = vunpack.c.l.b16 %v282
    %v322 = vunpack.c.l.b16 %v283
    %v323 = vunpack.c.l.b16 %v284
    %v324 = vunpack.c.l.b16 %v285
    %v325 = vunpack.c.l.b16 %v286
    %v326 = vunpack.c.l.b16 %v287
    %v327 = vunpack.c.l.b16 %v288
    %v328 = vunpack.c.l.b16 %v289
    %v329 = vunpack.c.l.b16 %v290
    %v330 = vunpack.c.l.b16 %v291
    %v331 = vpack.c.b16 %v316, %v315
    %v332 = vpack.c.b16 %v318, %v317
    %v333 = vpack.c.b16 %v320, %v319
    %v334 = vpack.c.b16 %v322, %v321
    %v335 = vpack.c.b16 %v324, %v323
    %v336 = vpack.c.b16 %v326, %v325
    %v337 = vpack.c.b16 %v328, %v327
    %v338 = vpack.c.b16 %v330, %v329
    %347 = vmatprep.subr.bf16.mxu0 0
    %348 = vmatpush1.bf16.msra.mxu0 %v338
    %349 = vmatprep.subr.bf16.mxu0 0
    %350 = vmatpush1.bf16.msra.mxu0 %v337
    %351 = vmatprep.subr.bf16.mxu0 0
    %352 = vmatpush1.bf16.msra.mxu0 %v336
    %353 = vmatprep.subr.bf16.mxu0 0
    %354 = vmatpush1.bf16.msra.mxu0 %v335
    %355 = vmatprep.subr.bf16.mxu0 0
    %356 = vmatpush1.bf16.msra.mxu0 %v334
    %357 = vmatprep.subr.bf16.mxu0 0
    %358 = vmatpush1.bf16.msra.mxu0 %v333
    %359 = vmatprep.subr.bf16.mxu0 0
    %360 = vmatpush1.bf16.msra.mxu0 %v332
    %361 = vmatprep.subr.bf16.mxu0 0
    %362 = vmatpush1.bf16.msra.mxu0 %v331
    %363 = vmatprep.subr.bf16.mxu0 0
    %364 = vmatpush2.bf16.msra.mxu0 0
    %365 = vmatprep.subr.bf16.mxu0 0
    %366 = vmatpush2.bf16.msra.mxu0 0
    %367 = vmatprep.subr.bf16.mxu0 0
    %368 = vmatpush2.bf16.msra.mxu0 0
    %369 = vmatprep.subr.bf16.mxu0 0
    %370 = vmatpush2.bf16.msra.mxu0 0
    %371 = vmatprep.subr.bf16.mxu0 0
    %372 = vmatpush2.bf16.msra.mxu0 0
    %373 = vmatprep.subr.bf16.mxu0 0
    %374 = vmatpush2.bf16.msra.mxu0 0
    %375 = vmatprep.subr.bf16.mxu0 0
    %376 = vmatpush2.bf16.msra.mxu0 0
    %377 = vmatprep.subr.bf16.mxu0 0
    %378 = vmatpush2.bf16.msra.mxu0 0
    %379 = vmatprep.mubr.bf16.mxu0 0
    %380 = vmatmul.mubr.bf16.gmra.mxu0 %v275
    %v381 = vpop.f32.mrf.mxu0
    %v382 = vadd.f32 %v297, %v381
    %v383 = vpop.f32.mrf.mxu0
    %v384 = vpop.f32.mrf.mxu0
    %v385 = vpop.f32.mrf.mxu0
    %386 = vdwg.mxu0
    %vm387 = vcmask 80896
    %388 = vst.msk [vmem:[#allocation2] sm:$0xff] %vm387, %v382
    // Predicated region
    $region38: #{_forward_with_actions.1} parent=1 // pred_check
      _
    $region39: #{_forward_with_actions.1} parent=1 // pred_check_branch
      %390 = sbr.rel (0) target = $region41
    $region40: #{_forward_with_actions.1} parent=1 // pred_region
      %s392 = ssub.s32 128, 128
      %393 = vsyncadd [#allocation3], %s392
      %s395 = sshll.u32 [#allocation2], 4
      %s396 = int_to_ptr.vmem [resolvable:$true] %s395
      %398 = dma.vmem_to_hbm [thread:$0]  %s396, 128, %s9, [#allocation3]
    $region41: #{_forward_with_actions.1} parent=1 // pred_fallthru
      _
    // Predicated region
    $region42: #{_forward_with_actions.1} parent=1 // pred_check
      _
    $region43: #{_forward_with_actions.1} parent=1 // pred_check_branch
      %400 = sbr.rel (0) target = $region45
    $region44: #{_forward_with_actions.1} parent=1 // pred_region
      %401 = dma.done [#allocation3], 128
    $region45: #{_forward_with_actions.1} parent=1 // pred_fallthru
      _
    %402 = vsyncpa [#allocation3], 1

</llo_original>
